<compile_context>
chip_gen: v5e
topology: v5e:2x2
jax: 0.10.0
libtpu: 0.0.40
codegen_flags: <defaults>
</compile_context>

<pallas_src>
import jax
import jax.numpy as jnp
from jax.experimental import pallas as pl
from jax.experimental.pallas import tpu as pltpu


def _round_up(x, m):
    return ((x + m - 1) // m) * m


def _make_fused_mlp_kernel(num_layers):
    """Build a kernel computing out = ((x @ W0 + b0) @ W1 + b1) ... in one body."""

    def kernel(*refs):
        # refs = (x_ref, w0_ref, b0_ref, w1_ref, b1_ref, ..., out_ref)
        x_ref = refs[0]
        out_ref = refs[-1]
        h = x_ref[...].astype(jnp.float32)
        for layer in range(num_layers):
            w_ref = refs[1 + 2 * layer]
            b_ref = refs[2 + 2 * layer]
            h = jnp.dot(h, w_ref[...], preferred_element_type=jnp.float32)
            h = h + b_ref[...].astype(jnp.float32)  # f32 epilogue (v5e-safe)
        out_ref[...] = h.astype(out_ref.dtype)

    return kernel


def predictor_forward(x, params, *, block_m=256):
    """Fused forward pass of Predictor: chained Linear layers, no activations.

    x:      (batch, code_dim)
    params: list of (W_t, b) with W_t shaped (in, out) and b shaped (1, out).
    """
    M, in_dim = x.shape
    num_layers = len(params)
    dims = [in_dim] + [w_t.shape[1] for (w_t, _) in params]

    # Lane-dense padding: features -> multiples of 128, batch -> multiple of
    # the batch tile (itself a multiple of 8 sublanes).
    dims_p = [_round_up(d, 128) for d in dims]
    bm = max(8, min(_round_up(block_m, 8), _round_up(M, 8)))
    Mp = _round_up(max(M, bm), bm)

    x_p = jnp.zeros((Mp, dims_p[0]), x.dtype).at[:M, :in_dim].set(x)

    flat_params = []
    for layer, (w_t, b) in enumerate(params):
        kp, np_ = dims_p[layer], dims_p[layer + 1]
        w_p = jnp.zeros((kp, np_), w_t.dtype).at[: w_t.shape[0], : w_t.shape[1]].set(w_t)
        b_p = jnp.zeros((1, np_), b.dtype).at[:, : b.shape[1]].set(b)
        flat_params += [w_p, b_p]

    grid = (Mp // bm,)

    # Activation tile marches along the batch axis; weights/biases stay
    # resident (block index (0, 0) for every grid step).
    in_specs = [pl.BlockSpec((bm, dims_p[0]), lambda i: (i, 0))]
    for layer in range(num_layers):
        kp, np_ = dims_p[layer], dims_p[layer + 1]
        in_specs.append(pl.BlockSpec((kp, np_), lambda i: (0, 0)))
        in_specs.append(pl.BlockSpec((1, np_), lambda i: (0, 0)))
    out_spec = pl.BlockSpec((bm, dims_p[-1]), lambda i: (i, 0))

    # Advisory cost estimate for the XLA scheduler.
    flops = sum(2 * Mp * dims_p[l] * dims_p[l + 1] for l in range(num_layers))
    bytes_accessed = (
        x_p.size * x_p.dtype.itemsize
        + sum(a.size * a.dtype.itemsize for a in flat_params)
        + Mp * dims_p[-1] * jnp.dtype(x.dtype).itemsize
    )

    # VMEM footprint per grid step: all padded weights/biases + 2x
    # double-buffered (bm, feat) tiles -- well under v7x's 64 MiB for these
    # shapes; shrink block_m if hidden dims grow very large.
    out_p = pl.pallas_call(
        _make_fused_mlp_kernel(num_layers),
        out_shape=jax.ShapeDtypeStruct((Mp, dims_p[-1]), x.dtype),
        grid=grid,
        in_specs=in_specs,
        out_specs=out_spec,
        compiler_params=pltpu.CompilerParams(
            dimension_semantics=("parallel",),
        ),
        cost_estimate=pl.CostEstimate(
            flops=flops, transcendentals=0, bytes_accessed=bytes_accessed
        ),
    )(x_p, *flat_params)

    return out_p[:M, : dims[-1]]


def init_predictor_params(key, code_dim, hidden_dim, num_layer, dtype=jnp.float32):
    """Deterministic init matching the Predictor layer shapes.

    Returns a list of (W_t, b) with W_t already transposed to (in, out).
    """
    dims = [code_dim] + list(hidden_dim) + [code_dim]
    assert len(hidden_dim) == num_layer
    params = []
    for layer in range(num_layer + 1):
        fan_in, fan_out = dims[layer], dims[layer + 1]
        key, kw, kb = jax.random.split(key, 3)
        bound = 1.0 / jnp.sqrt(jnp.asarray(fan_in, dtype))
        # PyTorch stores (out, in); we keep the transposed (in, out) layout.
        w_t = jax.random.uniform(kw, (fan_in, fan_out), dtype, -bound, bound)
        b = jax.random.uniform(kb, (1, fan_out), dtype, -bound, bound)
        params.append((w_t, b))
    return params


def predictor_forward_ref(x, params):
    out = x
    for (w_t, b) in params:
        out = out @ w_t + b
    return out


if __name__ == "__main__":
    # Small shapes consistent with the module: batch=8, code_dim=32,
    # hidden_dim=[64, 48], num_layer=2  ->  3 Linear layers total.
    batch = 8
    code_dim = 32
    hidden_dim = [64, 48]
    num_layer = 2

    key = jax.random.PRNGKey(0)
    key, kx = jax.random.split(key)
    x = jax.random.normal(kx, (batch, code_dim), dtype=jnp.float32)

    params = init_predictor_params(key, code_dim, hidden_dim, num_layer)

    y = predictor_forward(x, params)
    y = jax.block_until_ready(y)

    y_ref = predictor_forward_ref(x, params)
    assert y.shape == (batch, code_dim)
    assert jnp.allclose(y, y_ref, atol=1e-5, rtol=1e-5)

    print("KERNEL_OK")
</pallas_src>

<mosaic_0001>
module attributes {stable_mosaic.version = 11 : i64} {
  func.func @kernel(%arg0: i32, %arg1: memref<8x128xf32, #tpu.memory_space<vmem>>, %arg2: memref<128x128xf32, #tpu.memory_space<vmem>>, %arg3: memref<1x128xf32, #tpu.memory_space<vmem>>, %arg4: memref<128x128xf32, #tpu.memory_space<vmem>>, %arg5: memref<1x128xf32, #tpu.memory_space<vmem>>, %arg6: memref<128x128xf32, #tpu.memory_space<vmem>>, %arg7: memref<1x128xf32, #tpu.memory_space<vmem>>, %arg8: memref<8x128xf32, #tpu.memory_space<vmem>>) attributes {dimension_semantics = [#tpu.dimension_semantics<parallel>], iteration_bounds = array<i64: 1>, scalar_prefetch = 0 : i64, scratch_operands = 0 : i64, tpu.core_type = #tpu.core_type<tc>, window_params = [{transform_indices = @transform_0, window_bounds = array<i64: 8, 128>}, {pipeline_mode = #tpu.pipeline_mode<synchronous>, transform_indices = @transform_1, window_bounds = array<i64: 128, 128>}, {pipeline_mode = #tpu.pipeline_mode<synchronous>, transform_indices = @transform_2, window_bounds = array<i64: 1, 128>}, {pipeline_mode = #tpu.pipeline_mode<synchronous>, transform_indices = @transform_3, window_bounds = array<i64: 128, 128>}, {pipeline_mode = #tpu.pipeline_mode<synchronous>, transform_indices = @transform_4, window_bounds = array<i64: 1, 128>}, {pipeline_mode = #tpu.pipeline_mode<synchronous>, transform_indices = @transform_5, window_bounds = array<i64: 128, 128>}, {pipeline_mode = #tpu.pipeline_mode<synchronous>, transform_indices = @transform_6, window_bounds = array<i64: 1, 128>}, {transform_indices = @transform_7, window_bounds = array<i64: 8, 128>}]} {
    %c0 = arith.constant 0 : index
    %c0_0 = arith.constant 0 : index
    %0 = vector.load %arg1[%c0, %c0_0] : memref<8x128xf32, #tpu.memory_space<vmem>>, vector<8x128xf32>
    %c0_1 = arith.constant 0 : index
    %c0_2 = arith.constant 0 : index
    %1 = vector.load %arg2[%c0_1, %c0_2] : memref<128x128xf32, #tpu.memory_space<vmem>>, vector<128x128xf32>
    %cst = arith.constant dense<0.000000e+00> : vector<8x128xf32>
    %2 = tpu.matmul %0, %1, %cst {dimension_numbers = #tpu.dot_dimension_numbers<[1], [0], [0], [1], [0, 0, 1, 1], [], []>} : vector<8x128xf32>, vector<128x128xf32>, vector<8x128xf32> -> vector<8x128xf32>
    %c0_3 = arith.constant 0 : index
    %c0_4 = arith.constant 0 : index
    %3 = vector.load %arg3[%c0_3, %c0_4] : memref<1x128xf32, #tpu.memory_space<vmem>>, vector<1x128xf32>
    %4 = vector.broadcast %3 : vector<1x128xf32> to vector<8x128xf32>
    %5 = arith.addf %2, %4 : vector<8x128xf32>
    %c0_5 = arith.constant 0 : index
    %c0_6 = arith.constant 0 : index
    %6 = vector.load %arg4[%c0_5, %c0_6] : memref<128x128xf32, #tpu.memory_space<vmem>>, vector<128x128xf32>
    %cst_7 = arith.constant dense<0.000000e+00> : vector<8x128xf32>
    %7 = tpu.matmul %5, %6, %cst_7 {dimension_numbers = #tpu.dot_dimension_numbers<[1], [0], [0], [1], [0, 0, 1, 1], [], []>} : vector<8x128xf32>, vector<128x128xf32>, vector<8x128xf32> -> vector<8x128xf32>
    %c0_8 = arith.constant 0 : index
    %c0_9 = arith.constant 0 : index
    %8 = vector.load %arg5[%c0_8, %c0_9] : memref<1x128xf32, #tpu.memory_space<vmem>>, vector<1x128xf32>
    %9 = vector.broadcast %8 : vector<1x128xf32> to vector<8x128xf32>
    %10 = arith.addf %7, %9 : vector<8x128xf32>
    %c0_10 = arith.constant 0 : index
    %c0_11 = arith.constant 0 : index
    %11 = vector.load %arg6[%c0_10, %c0_11] : memref<128x128xf32, #tpu.memory_space<vmem>>, vector<128x128xf32>
    %cst_12 = arith.constant dense<0.000000e+00> : vector<8x128xf32>
    %12 = tpu.matmul %10, %11, %cst_12 {dimension_numbers = #tpu.dot_dimension_numbers<[1], [0], [0], [1], [0, 0, 1, 1], [], []>} : vector<8x128xf32>, vector<128x128xf32>, vector<8x128xf32> -> vector<8x128xf32>
    %c0_13 = arith.constant 0 : index
    %c0_14 = arith.constant 0 : index
    %13 = vector.load %arg7[%c0_13, %c0_14] : memref<1x128xf32, #tpu.memory_space<vmem>>, vector<1x128xf32>
    %14 = vector.broadcast %13 : vector<1x128xf32> to vector<8x128xf32>
    %15 = arith.addf %12, %14 : vector<8x128xf32>
    %c0_15 = arith.constant 0 : index
    %c0_16 = arith.constant 0 : index
    %16 = vector.load %arg8[%c0_15, %c0_16] : memref<8x128xf32, #tpu.memory_space<vmem>>, vector<8x128xf32>
    tpu.vector_store %arg8[%c0_15, %c0_16], %15 {strides = array<i32>} : memref<8x128xf32, #tpu.memory_space<vmem>>, vector<8x128xf32>,
    return
  }
  func.func @transform_0(%arg0: i32) -> (i32, i32) {
    %c0_i32 = arith.constant 0 : i32
    %c0_i32_0 = arith.constant 0 : i32
    return %arg0, %c0_i32 : i32, i32
  }
  func.func @transform_1(%arg0: i32) -> (i32, i32) {
    %c0_i32 = arith.constant 0 : i32
    %c0_i32_0 = arith.constant 0 : i32
    %c0_i32_1 = arith.constant 0 : i32
    return %c0_i32, %c0_i32_0 : i32, i32
  }
  func.func @transform_2(%arg0: i32) -> (i32, i32) {
    %c0_i32 = arith.constant 0 : i32
    %c0_i32_0 = arith.constant 0 : i32
    %c0_i32_1 = arith.constant 0 : i32
    return %c0_i32, %c0_i32_0 : i32, i32
  }
  func.func @transform_3(%arg0: i32) -> (i32, i32) {
    %c0_i32 = arith.constant 0 : i32
    %c0_i32_0 = arith.constant 0 : i32
    %c0_i32_1 = arith.constant 0 : i32
    return %c0_i32, %c0_i32_0 : i32, i32
  }
  func.func @transform_4(%arg0: i32) -> (i32, i32) {
    %c0_i32 = arith.constant 0 : i32
    %c0_i32_0 = arith.constant 0 : i32
    %c0_i32_1 = arith.constant 0 : i32
    return %c0_i32, %c0_i32_0 : i32, i32
  }
  func.func @transform_5(%arg0: i32) -> (i32, i32) {
    %c0_i32 = arith.constant 0 : i32
    %c0_i32_0 = arith.constant 0 : i32
    %c0_i32_1 = arith.constant 0 : i32
    return %c0_i32, %c0_i32_0 : i32, i32
  }
  func.func @transform_6(%arg0: i32) -> (i32, i32) {
    %c0_i32 = arith.constant 0 : i32
    %c0_i32_0 = arith.constant 0 : i32
    %c0_i32_1 = arith.constant 0 : i32
    return %c0_i32, %c0_i32_0 : i32, i32
  }
  func.func @transform_7(%arg0: i32) -> (i32, i32) {
    %c0_i32 = arith.constant 0 : i32
    %c0_i32_0 = arith.constant 0 : i32
    return %arg0, %c0_i32 : i32, i32
  }
}

</mosaic_0001>

<llo_original>
// kernel: tpu_custom_call.1
$region0: #{tpu_custom_call.1}
  #allocation0 [shape = 'u32[]', space=smem, size = 0x4, offset = 0x4, fixed_abs, tag = 'smem constant byte address 0x4 - core index']
  #allocation1 [shape = 'u32[72,128]{1,0:T(1,128)}', space=vmem, size = 0x9000, scoped, tag = 'internal scratch']
  %s0 = inlined_call_operand.hbm [shape: f32[8,128], index: 0, kind: input, shape index: {}]
  %s1 = inlined_call_operand.hbm [shape: f32[128,128], index: 1, kind: input, shape index: {}]
  %s2 = inlined_call_operand.vmem [shape: f32[1,128], index: 2, kind: input, shape index: {}]
  %s3 = inlined_call_operand.hbm [shape: f32[128,128], index: 3, kind: input, shape index: {}]
  %s4 = inlined_call_operand.vmem [shape: f32[1,128], index: 4, kind: input, shape index: {}]
  %s5 = inlined_call_operand.hbm [shape: f32[128,128], index: 5, kind: input, shape index: {}]
  %s6 = inlined_call_operand.vmem [shape: f32[1,128], index: 6, kind: input, shape index: {}]
  %s7 = inlined_call_operand.hbm [shape: f32[8,128], index: 7, kind: output, shape index: {}]
  %s8 = sld [smem:[#allocation0]]
  $region54: #{tpu_custom_call.1} parent=0
    _
  %s10 = ssub.s32 1, %s8
  %s11 = scalar_select 0, %s10, %s8
  $region1: #{tpu_custom_call.1} parent=0
    #allocation2 [shape = 'u8[4096]{0}', space=vmem, size = 0x1000, scoped, tag = 'input window, operand 0, single buffered']
    #allocation3 [shape = 's32[1]{0}', space=sflag, size = 0x4, scoped, tag = 'scoped memory for tpu_custom_call.1']
    #allocation4 [shape = 's32[1]{0}', space=sflag, size = 0x4, scoped, tag = 'scoped memory for tpu_custom_call.1']
    #allocation5 [shape = 'u8[65536]{0}', space=vmem, size = 0x10000, scoped, tag = 'input window, operand 1, single buffered']
    #allocation6 [shape = 's32[1]{0}', space=sflag, size = 0x4, scoped, tag = 'scoped memory for tpu_custom_call.1']
    #allocation7 [shape = 'u8[65536]{0}', space=vmem, size = 0x10000, scoped, tag = 'input window, operand 3, single buffered']
    #allocation8 [shape = 'u8[65536]{0}', space=vmem, size = 0x10000, scoped, tag = 'input window, operand 5, single buffered']
    #allocation9 [shape = 's32[1]{0}', space=sflag, size = 0x4, scoped, tag = 'scoped memory for tpu_custom_call.1']
    #allocation10 [shape = 'u8[4096]{0}', space=vmem, size = 0x1000, scoped, tag = 'output window, operand 0, single buffered']
    %12 = vsyncpa [#allocation3], 0
    %13 = vsyncpa [#allocation6], 0
    %14 = vsyncpa [#allocation9], 0
    %15 = vsyncpa [#allocation4], 0
    // Predicated region
    $region2: #{tpu_custom_call.1} parent=1 // pred_check
      _
    $region3: #{tpu_custom_call.1} parent=1 // pred_check_branch
      %17 = sbr.rel (0) target = $region5
    $region4: #{tpu_custom_call.1} parent=1 // pred_region
      %19 = vsyncadd [#allocation3], 0
      %s21 = sshll.u32 %s0, 4
      %s22 = int_to_ptr.hbm [resolvable:$true] %s21
      %s23 = sshll.u32 [#allocation2], 4
      %s24 = int_to_ptr.vmem [resolvable:$true] %s23
      %26 = dma.hbm_to_vmem [thread:$0]  %s22, 128, %s24, [#allocation3]
    $region5: #{tpu_custom_call.1} parent=1 // pred_fallthru
      _
    // Predicated region
    $region6: #{tpu_custom_call.1} parent=1 // pred_check
      _
    $region7: #{tpu_custom_call.1} parent=1 // pred_check_branch
      %28 = sbr.rel (0) target = $region9
    $region8: #{tpu_custom_call.1} parent=1 // pred_region
      %30 = vsyncadd [#allocation6], 0
      %s31 = sshll.u32 %s1, 4
      %s32 = int_to_ptr.hbm [resolvable:$true] %s31
      %s33 = sshll.u32 [#allocation5], 4
      %s34 = int_to_ptr.vmem [resolvable:$true] %s33
      %39 = dma.hbm_to_vmem [thread:$0]  %s32, 2048, %s34, [#allocation6], 128, 128, 8
    $region9: #{tpu_custom_call.1} parent=1 // pred_fallthru
      _
    // Predicated region
    $region10: #{tpu_custom_call.1} parent=1 // pred_check
      _
    $region11: #{tpu_custom_call.1} parent=1 // pred_check_branch
      %41 = sbr.rel (0) target = $region13
    $region12: #{tpu_custom_call.1} parent=1 // pred_region
      _
    $region13: #{tpu_custom_call.1} parent=1 // pred_fallthru
      _
    // Predicated region
    $region14: #{tpu_custom_call.1} parent=1 // pred_check
      _
    $region15: #{tpu_custom_call.1} parent=1 // pred_check_branch
      %43 = sbr.rel (0) target = $region17
    $region16: #{tpu_custom_call.1} parent=1 // pred_region
      %45 = vsyncadd [#allocation6], 0
      %s46 = sshll.u32 %s3, 4
      %s47 = int_to_ptr.hbm [resolvable:$true] %s46
      %s48 = sshll.u32 [#allocation7], 4
      %s49 = int_to_ptr.vmem [resolvable:$true] %s48
      %54 = dma.hbm_to_vmem [thread:$0]  %s47, 2048, %s49, [#allocation6], 128, 128, 8
    $region17: #{tpu_custom_call.1} parent=1 // pred_fallthru
      _
    // Predicated region
    $region18: #{tpu_custom_call.1} parent=1 // pred_check
      _
    $region19: #{tpu_custom_call.1} parent=1 // pred_check_branch
      %56 = sbr.rel (0) target = $region21
    $region20: #{tpu_custom_call.1} parent=1 // pred_region
      _
    $region21: #{tpu_custom_call.1} parent=1 // pred_fallthru
      _
    // Predicated region
    $region22: #{tpu_custom_call.1} parent=1 // pred_check
      _
    $region23: #{tpu_custom_call.1} parent=1 // pred_check_branch
      %58 = sbr.rel (0) target = $region25
    $region24: #{tpu_custom_call.1} parent=1 // pred_region
      %60 = vsyncadd [#allocation9], 0
      %s61 = sshll.u32 %s5, 4
      %s62 = int_to_ptr.hbm [resolvable:$true] %s61
      %s63 = sshll.u32 [#allocation8], 4
      %s64 = int_to_ptr.vmem [resolvable:$true] %s63
      %69 = dma.hbm_to_vmem [thread:$0]  %s62, 2048, %s64, [#allocation9], 128, 128, 8
    $region25: #{tpu_custom_call.1} parent=1 // pred_fallthru
      _
    // Predicated region
    $region26: #{tpu_custom_call.1} parent=1 // pred_check
      _
    $region27: #{tpu_custom_call.1} parent=1 // pred_check_branch
      %71 = sbr.rel (0) target = $region29
    $region28: #{tpu_custom_call.1} parent=1 // pred_region
      _
    $region29: #{tpu_custom_call.1} parent=1 // pred_fallthru
      _
    // Predicated region
    $region30: #{tpu_custom_call.1} parent=1 // pred_check
      _
    $region31: #{tpu_custom_call.1} parent=1 // pred_check_branch
      %73 = sbr.rel (0) target = $region33
    $region32: #{tpu_custom_call.1} parent=1 // pred_region
      %75 = dma.done [#allocation3], 128
    $region33: #{tpu_custom_call.1} parent=1 // pred_fallthru
      _
    // Predicated region
    $region34: #{tpu_custom_call.1} parent=1 // pred_check
      _
    $region35: #{tpu_custom_call.1} parent=1 // pred_check_branch
      %77 = sbr.rel (0) target = $region37
    $region36: #{tpu_custom_call.1} parent=1 // pred_region
      %79 = dma.done [#allocation6], 2048
    $region37: #{tpu_custom_call.1} parent=1 // pred_fallthru
      _
    // Predicated region
    $region38: #{tpu_custom_call.1} parent=1 // pred_check
      _
    $region39: #{tpu_custom_call.1} parent=1 // pred_check_branch
      %81 = sbr.rel (0) target = $region41
    $region40: #{tpu_custom_call.1} parent=1 // pred_region
      %83 = dma.done [#allocation6], 2048
    $region41: #{tpu_custom_call.1} parent=1 // pred_fallthru
      _
    // Predicated region
    $region42: #{tpu_custom_call.1} parent=1 // pred_check
      _
    $region43: #{tpu_custom_call.1} parent=1 // pred_check_branch
      %85 = sbr.rel (0) target = $region45
    $region44: #{tpu_custom_call.1} parent=1 // pred_region
      %87 = dma.done [#allocation9], 2048
    $region45: #{tpu_custom_call.1} parent=1 // pred_fallthru
      _
    %v88 = vld [vmem:[#allocation2] sm:$0xff]
    %v89 = vld [vmem:[#allocation5] sm:$0xff]
    %v90 = vld [vmem:[#allocation5 + $0x8] sm:$0xff]
    %v91 = vld [vmem:[#allocation5 + $0x10] sm:$0xff]
    %v92 = vld [vmem:[#allocation5 + $0x18] sm:$0xff]
    %v93 = vld [vmem:[#allocation5 + $0x20] sm:$0xff]
    %v94 = vld [vmem:[#allocation5 + $0x28] sm:$0xff]
    %v95 = vld [vmem:[#allocation5 + $0x30] sm:$0xff]
    %v96 = vld [vmem:[#allocation5 + $0x38] sm:$0xff]
    %v97 = vld [vmem:[#allocation5 + $0x40] sm:$0xff]
    %v98 = vld [vmem:[#allocation5 + $0x48] sm:$0xff]
    %v99 = vld [vmem:[#allocation5 + $0x50] sm:$0xff]
    %v100 = vld [vmem:[#allocation5 + $0x58] sm:$0xff]
    %v101 = vld [vmem:[#allocation5 + $0x60] sm:$0xff]
    %v102 = vld [vmem:[#allocation5 + $0x68] sm:$0xff]
    %v103 = vld [vmem:[#allocation5 + $0x70] sm:$0xff]
    %v104 = vld [vmem:[#allocation5 + $0x78] sm:$0xff]
    %v105 = vld [vmem:[%s2] sm:$0x1]
    %v107 = vperm.slane %v105, 0
    %109 = vmatpush.msra.mxu0 %v104
    %110 = vmatpush.msra.mxu0 %v103
    %111 = vmatpush.msra.mxu0 %v102
    %112 = vmatpush.msra.mxu0 %v101
    %113 = vmatpush.msra.mxu0 %v100
    %114 = vmatpush.msra.mxu0 %v99
    %115 = vmatpush.msra.mxu0 %v98
    %116 = vmatpush.msra.mxu0 %v97
    %117 = vmatpush.msra.mxu0 %v96
    %118 = vmatpush.msra.mxu0 %v95
    %119 = vmatpush.msra.mxu0 %v94
    %120 = vmatpush.msra.mxu0 %v93
    %121 = vmatpush.msra.mxu0 %v92
    %122 = vmatpush.msra.mxu0 %v91
    %123 = vmatpush.msra.mxu0 %v90
    %124 = vmatpush.msra.mxu0 %v89
    %125 = vmatmul.f32.gmra.mxu0 %v88
    %v126 = vpop.f32.mrf.mxu0
    %v127 = vadd.f32 %v107, %v126
    %128 = vdwg.mxu0
    %v129 = vld [vmem:[#allocation7] sm:$0xff]
    %v130 = vld [vmem:[#allocation7 + $0x8] sm:$0xff]
    %v131 = vld [vmem:[#allocation7 + $0x10] sm:$0xff]
    %v132 = vld [vmem:[#allocation7 + $0x18] sm:$0xff]
    %v133 = vld [vmem:[#allocation7 + $0x20] sm:$0xff]
    %v134 = vld [vmem:[#allocation7 + $0x28] sm:$0xff]
    %v135 = vld [vmem:[#allocation7 + $0x30] sm:$0xff]
    %v136 = vld [vmem:[#allocation7 + $0x38] sm:$0xff]
    %v137 = vld [vmem:[#allocation7 + $0x40] sm:$0xff]
    %v138 = vld [vmem:[#allocation7 + $0x48] sm:$0xff]
    %v139 = vld [vmem:[#allocation7 + $0x50] sm:$0xff]
    %v140 = vld [vmem:[#allocation7 + $0x58] sm:$0xff]
    %v141 = vld [vmem:[#allocation7 + $0x60] sm:$0xff]
    %v142 = vld [vmem:[#allocation7 + $0x68] sm:$0xff]
    %v143 = vld [vmem:[#allocation7 + $0x70] sm:$0xff]
    %v144 = vld [vmem:[#allocation7 + $0x78] sm:$0xff]
    %v145 = vld [vmem:[%s4] sm:$0x1]
    %v147 = vperm.slane %v145, 0
    %149 = vmatpush.msra.mxu0 %v144
    %150 = vmatpush.msra.mxu0 %v143
    %151 = vmatpush.msra.mxu0 %v142
    %152 = vmatpush.msra.mxu0 %v141
    %153 = vmatpush.msra.mxu0 %v140
    %154 = vmatpush.msra.mxu0 %v139
    %155 = vmatpush.msra.mxu0 %v138
    %156 = vmatpush.msra.mxu0 %v137
    %157 = vmatpush.msra.mxu0 %v136
    %158 = vmatpush.msra.mxu0 %v135
    %159 = vmatpush.msra.mxu0 %v134
    %160 = vmatpush.msra.mxu0 %v133
    %161 = vmatpush.msra.mxu0 %v132
    %162 = vmatpush.msra.mxu0 %v131
    %163 = vmatpush.msra.mxu0 %v130
    %164 = vmatpush.msra.mxu0 %v129
    %165 = vmatmul.f32.gmra.mxu0 %v127
    %v166 = vpop.f32.mrf.mxu0
    %v167 = vadd.f32 %v147, %v166
    %168 = vdwg.mxu0
    %v169 = vld [vmem:[#allocation8] sm:$0xff]
    %v170 = vld [vmem:[#allocation8 + $0x8] sm:$0xff]
    %v171 = vld [vmem:[#allocation8 + $0x10] sm:$0xff]
    %v172 = vld [vmem:[#allocation8 + $0x18] sm:$0xff]
    %v173 = vld [vmem:[#allocation8 + $0x20] sm:$0xff]
    %v174 = vld [vmem:[#allocation8 + $0x28] sm:$0xff]
    %v175 = vld [vmem:[#allocation8 + $0x30] sm:$0xff]
    %v176 = vld [vmem:[#allocation8 + $0x38] sm:$0xff]
    %v177 = vld [vmem:[#allocation8 + $0x40] sm:$0xff]
    %v178 = vld [vmem:[#allocation8 + $0x48] sm:$0xff]
    %v179 = vld [vmem:[#allocation8 + $0x50] sm:$0xff]
    %v180 = vld [vmem:[#allocation8 + $0x58] sm:$0xff]
    %v181 = vld [vmem:[#allocation8 + $0x60] sm:$0xff]
    %v182 = vld [vmem:[#allocation8 + $0x68] sm:$0xff]
    %v183 = vld [vmem:[#allocation8 + $0x70] sm:$0xff]
    %v184 = vld [vmem:[#allocation8 + $0x78] sm:$0xff]
    %v185 = vld [vmem:[%s6] sm:$0x1]
    %v187 = vperm.slane %v185, 0
    %189 = vmatpush.msra.mxu0 %v184
    %190 = vmatpush.msra.mxu0 %v183
    %191 = vmatpush.msra.mxu0 %v182
    %192 = vmatpush.msra.mxu0 %v181
    %193 = vmatpush.msra.mxu0 %v180
    %194 = vmatpush.msra.mxu0 %v179
    %195 = vmatpush.msra.mxu0 %v178
    %196 = vmatpush.msra.mxu0 %v177
    %197 = vmatpush.msra.mxu0 %v176
    %198 = vmatpush.msra.mxu0 %v175
    %199 = vmatpush.msra.mxu0 %v174
    %200 = vmatpush.msra.mxu0 %v173
    %201 = vmatpush.msra.mxu0 %v172
    %202 = vmatpush.msra.mxu0 %v171
    %203 = vmatpush.msra.mxu0 %v170
    %204 = vmatpush.msra.mxu0 %v169
    %205 = vmatmul.f32.gmra.mxu0 %v167
    %v206 = vpop.f32.mrf.mxu0
    %v207 = vadd.f32 %v187, %v206
    %208 = vdwg.mxu0
    %209 = vst [vmem:[#allocation10] sm:$0xff] %v207
    // Predicated region
    $region46: #{tpu_custom_call.1} parent=1 // pred_check
      _
    $region47: #{tpu_custom_call.1} parent=1 // pred_check_branch
      %211 = sbr.rel (0) target = $region49
    $region48: #{tpu_custom_call.1} parent=1 // pred_region
      %213 = vsyncadd [#allocation4], 0
      %s215 = sshll.u32 [#allocation10], 4
      %s216 = int_to_ptr.vmem [resolvable:$true] %s215
      %s217 = sshll.u32 %s7, 4
      %s218 = int_to_ptr.hbm [resolvable:$true] %s217
      %220 = dma.vmem_to_hbm [thread:$0]  %s216, 128, %s218, [#allocation4]
    $region49: #{tpu_custom_call.1} parent=1 // pred_fallthru
      _
    // Predicated region
    $region50: #{tpu_custom_call.1} parent=1 // pred_check
      _
    $region51: #{tpu_custom_call.1} parent=1 // pred_check_branch
      %222 = sbr.rel (0) target = $region53
    $region52: #{tpu_custom_call.1} parent=1 // pred_region
      %224 = dma.done [#allocation4], 128
    $region53: #{tpu_custom_call.1} parent=1 // pred_fallthru
      _
    %225 = vsyncpa [#allocation3], 1
    %226 = vsyncpa [#allocation6], 1
    %227 = vsyncpa [#allocation9], 1
    %228 = vsyncpa [#allocation4], 1

</llo_original>
